<compile_context>
chip_gen: v7x
topology: tpu7x:2x2x1
jax: 0.10.0
libtpu: 0.0.40
codegen_flags: <defaults>
</compile_context>

<pallas_src>
import jax
import jax.numpy as jnp
from jax import lax
from jax.experimental import pallas as pl
from jax.experimental.pallas import tpu as pltpu


def _round_up(x, m):
    return -(-x // m) * m


def _bilinear_kernel(x1_ref, x2_ref, w_ref, o_ref):
    # x1_ref, x2_ref: (TN, L)       natural row-major input blocks
    # w_ref:          (Op*H + L, L) rows [0, Op*H): transposed bilinear weight
    #                               (row o*H+h holds W[:, h, o]);
    #                               rows [Op*H, Op*H+L): identity(L)
    # o_ref:          (Op+1, TN)    lane-dense output: rows 0..Op-1 = bilinear
    #                               scores, row Op = identity dot-product score
    x1 = x1_ref[...]
    x2 = x2_ref[...]
    w = w_ref[...]

    tn, l_dim = x1.shape
    op = o_ref.shape[0] - 1
    oph = w.shape[0] - l_dim
    h_dim = oph // op

    # Two MXU dots contracting over L against the inputs' natural layout
    # ('od,nd->on'): no transpose / concat of the big tiles anywhere.
    dn = (((1,), (1,)), ((), ()))
    h1 = lax.dot_general(w, x1, dn, preferred_element_type=jnp.float32)
    h2 = lax.dot_general(w, x2, dn, preferred_element_type=jnp.float32)

    prod = h1 * h2                                            # (Op*H+L, TN)

    # scores_T[o, n] = sum_h prod[o*H+h, n]   (sublane reduce, idle XLU/VPU)
    scores_t = prod[:oph].reshape(op, h_dim, tn).sum(axis=1)  # (Op, TN)
    # id_T[0, n] = sum_l x1[n, l] * x2[n, l]  via the identity rows of w
    id_t = prod[oph:].sum(axis=0, keepdims=True)              # (1, TN)

    # Lane-dense sliced stores; no in-kernel concatenate of the output.
    o_ref[:op, :] = scores_t.astype(o_ref.dtype)
    o_ref[op:, :] = id_t.astype(o_ref.dtype)


def bilinear_forward(x1, x2, bilinear_mat, *, row_tile=2048):
    """x1, x2: (B, C, L); bilinear_mat: (L, H, O'). Returns (B, C, O'+1).

    row_tile: number of (b, c) rows handled per grid step (rounded up to a
    multiple of 128). Guidance: v5e ~1024-2048, v6e ~2048-4096, v7x ~4096-8192
    (keep at least ~4 grid steps on v7x so both TensorCores get work and the
    per-core pipeline has >=2 iterations). VMEM stays ~10 MiB even at 8192
    (inputs double-buffered + f32 intermediates), under the 32 MiB scoped
    default on all generations. For N < 128 the whole problem is one block.
    """
    B, C, L = x1.shape
    Lw, H, Op = bilinear_mat.shape
    assert Lw == L
    # TODO(synk): output_size == 1 (Op == 0: identity-score-only path of the
    # module, enable_learnable_bilinear=False) is not implemented here.
    assert Op >= 1, "learnable bilinear path requires output_size - 1 >= 1"
    N = B * C
    O_total = Op + 1

    # No host-side pad: ragged last block is handled by the grid (OOB input
    # rows never contaminate valid output columns; OOB output lanes are not
    # written back).
    if N < 128:
        tile = N                       # full-dim blocks, single grid step
    else:
        tile = min(_round_up(row_tile, 128), _round_up(N, 128))
    num_row_blocks = pl.cdiv(N, tile)

    x1_2d = x1.reshape(N, L)           # zero-copy reshape; no transpose/pad
    x2_2d = x2.reshape(N, L)

    # (L, H, O') -> (O'*H, L): row o*H+h = W[:, h, o] (contiguous per-output
    # hidden blocks -> contiguous sublane reduce). Append identity(L) so the
    # same matmuls also yield x^T rows for the identity dot-product score.
    w_t = jnp.transpose(bilinear_mat, (2, 1, 0)).reshape(Op * H, L)
    w_aug = jnp.concatenate([w_t, jnp.eye(L, dtype=w_t.dtype)], axis=0)

    # TODO(synk): dropout is omitted (inference mode); a training-time dropout
    # mask would need pltpu.prng_* inside the kernel.
    out_t = pl.pallas_call(
        _bilinear_kernel,
        out_shape=jax.ShapeDtypeStruct((O_total, N), x1.dtype),
        grid_spec=pltpu.PrefetchScalarGridSpec(
            num_scalar_prefetch=0,
            grid=(num_row_blocks,),
            in_specs=[
                pl.BlockSpec((tile, L), lambda i: (i, 0)),
                pl.BlockSpec((tile, L), lambda i: (i, 0)),
                # Constant index_map: the tiny weight is DMA'd once and reused
                # (duplicate pipeline buffer ~7 KiB here; at production
                # O'*H x L use pipeline_mode=pl.Buffered(1) or K-tiling).
                pl.BlockSpec((Op * H + L, L), lambda i: (0, 0)),
            ],
            out_specs=pl.BlockSpec((O_total, tile), lambda i: (0, i)),
        ),
        compiler_params=pltpu.CompilerParams(
            dimension_semantics=("parallel",)),
    )(x1_2d, x2_2d, w_aug)

    # Only the tiny (O'+1, N) result is transposed back in XLA.
    return out_t.T.reshape(B, C, O_total)


def bilinear_reference(x1, x2, bilinear_mat):
    h1 = jnp.einsum('bcl,lho->bcoh', x1, bilinear_mat)
    h2 = jnp.einsum('bcl,lho->bcoh', x2, bilinear_mat)
    scores = jnp.einsum('bcoh,bcoh->bco', h1, h2)
    id_score = jnp.einsum('bci,bci->bc', x1, x2)[..., None]
    return jnp.concatenate([scores, id_score], axis=-1)


if __name__ == "__main__":
    # Module config: input_size=32, output_size=4, include_id=True
    #   -> learnable output O' = 3, hidden H = input_size // 4 = 8
    input_size = 32
    output_size = 4
    hidden_size = input_size // 4
    Op = output_size - 1

    key = jax.random.PRNGKey(0)
    k1, k2, kw, k3, k4 = jax.random.split(key, 5)

    # nn.init.normal_ on torch.empty(input_size, hidden_size, output_size-1)
    bilinear_mat = jax.random.normal(kw, (input_size, hidden_size, Op),
                                     dtype=jnp.float32)

    # --- Small-shape check (single full block, N = 16 < 128) ---
    B, C = 2, 8
    x1 = jax.random.normal(k1, (B, C, input_size), dtype=jnp.float32)
    x2 = jax.random.normal(k2, (B, C, input_size), dtype=jnp.float32)

    out = jax.block_until_ready(bilinear_forward(x1, x2, bilinear_mat))
    ref = bilinear_reference(x1, x2, bilinear_mat)
    assert out.shape == (B, C, output_size), out.shape
    assert jnp.allclose(out, ref, atol=1e-3, rtol=1e-3), "small-shape mismatch"

    # --- Tiled path check: N = 300 rows, tile = 128 -> 3 grid steps with a
    # ragged (partial) last block, exercising the pad-free boundary handling.
    B2, C2 = 3, 100
    y1 = jax.random.normal(k3, (B2, C2, input_size), dtype=jnp.float32)
    y2 = jax.random.normal(k4, (B2, C2, input_size), dtype=jnp.float32)

    out2 = jax.block_until_ready(
        bilinear_forward(y1, y2, bilinear_mat, row_tile=128))
    ref2 = bilinear_reference(y1, y2, bilinear_mat)
    assert out2.shape == (B2, C2, output_size), out2.shape
    assert jnp.allclose(out2, ref2, atol=1e-3, rtol=1e-3), "tiled-path mismatch"

    print("KERNEL_OK")
</pallas_src>

<mosaic_0001>
module attributes {stable_mosaic.version = 11 : i64} {
  func.func @_bilinear_kernel(%arg0: i32, %arg1: memref<16x32xf32, #tpu.memory_space<vmem>>, %arg2: memref<16x32xf32, #tpu.memory_space<vmem>>, %arg3: memref<56x32xf32, #tpu.memory_space<vmem>>, %arg4: memref<4x16xf32, #tpu.memory_space<vmem>>) attributes {dimension_semantics = [#tpu.dimension_semantics<parallel>], iteration_bounds = array<i64: 1>, scalar_prefetch = 0 : i64, scratch_operands = 0 : i64, tpu.core_type = #tpu.core_type<tc>, window_params = [{transform_indices = @transform_0, window_bounds = array<i64: 16, 32>}, {transform_indices = @transform_1, window_bounds = array<i64: 16, 32>}, {pipeline_mode = #tpu.pipeline_mode<synchronous>, transform_indices = @transform_2, window_bounds = array<i64: 56, 32>}, {transform_indices = @transform_3, window_bounds = array<i64: 4, 16>}]} {
    %c0 = arith.constant 0 : index
    %c0_0 = arith.constant 0 : index
    %0 = vector.load %arg1[%c0, %c0_0] : memref<16x32xf32, #tpu.memory_space<vmem>>, vector<16x32xf32>
    %c0_1 = arith.constant 0 : index
    %c0_2 = arith.constant 0 : index
    %1 = vector.load %arg2[%c0_1, %c0_2] : memref<16x32xf32, #tpu.memory_space<vmem>>, vector<16x32xf32>
    %c0_3 = arith.constant 0 : index
    %c0_4 = arith.constant 0 : index
    %2 = vector.load %arg3[%c0_3, %c0_4] : memref<56x32xf32, #tpu.memory_space<vmem>>, vector<56x32xf32>
    %cst = arith.constant dense<0.000000e+00> : vector<56x16xf32>
    %3 = tpu.matmul %2, %0, %cst {dimension_numbers = #tpu.dot_dimension_numbers<[1], [1], [0], [0], [0, 0, 1, 0], [], []>} : vector<56x32xf32>, vector<16x32xf32>, vector<56x16xf32> -> vector<56x16xf32>
    %cst_5 = arith.constant dense<0.000000e+00> : vector<56x16xf32>
    %4 = tpu.matmul %2, %1, %cst_5 {dimension_numbers = #tpu.dot_dimension_numbers<[1], [1], [0], [0], [0, 0, 1, 0], [], []>} : vector<56x32xf32>, vector<16x32xf32>, vector<56x16xf32> -> vector<56x16xf32>
    %5 = arith.mulf %3, %4 : vector<56x16xf32>
    %6 = vector.extract_strided_slice %5 {offsets = [0, 0], sizes = [24, 16], strides = [1, 1]} : vector<56x16xf32> to vector<24x16xf32>
    %7 = vector.shape_cast %6 : vector<24x16xf32> to vector<3x8x16xf32>
    %cst_6 = arith.constant dense<0.000000e+00> : vector<3x16xf32>
    %8 = vector.multi_reduction <add>, %7, %cst_6 [1] : vector<3x8x16xf32> to vector<3x16xf32>
    %9 = vector.extract_strided_slice %5 {offsets = [24, 0], sizes = [32, 16], strides = [1, 1]} : vector<56x16xf32> to vector<32x16xf32>
    %cst_7 = arith.constant dense<0.000000e+00> : vector<16xf32>
    %10 = vector.multi_reduction <add>, %9, %cst_7 [0] : vector<32x16xf32> to vector<16xf32>
    %11 = vector.shape_cast %10 : vector<16xf32> to vector<1x16xf32>
    %c0_8 = arith.constant 0 : index
    %c0_9 = arith.constant 0 : index
    %12 = vector.load %arg4[%c0_8, %c0_9] : memref<4x16xf32, #tpu.memory_space<vmem>>, vector<3x16xf32>
    tpu.vector_store %arg4[%c0_8, %c0_9], %8 {strides = array<i32>} : memref<4x16xf32, #tpu.memory_space<vmem>>, vector<3x16xf32>,
    %c3 = arith.constant 3 : index
    %c0_10 = arith.constant 0 : index
    %13 = vector.load %arg4[%c3, %c0_10] : memref<4x16xf32, #tpu.memory_space<vmem>>, vector<1x16xf32>
    tpu.vector_store %arg4[%c3, %c0_10], %11 {strides = array<i32>} : memref<4x16xf32, #tpu.memory_space<vmem>>, vector<1x16xf32>,
    return
  }
  func.func @transform_0(%arg0: i32) -> (i32, i32) {
    %c0_i32 = arith.constant 0 : i32
    %c0_i32_0 = arith.constant 0 : i32
    return %arg0, %c0_i32 : i32, i32
  }
  func.func @transform_1(%arg0: i32) -> (i32, i32) {
    %c0_i32 = arith.constant 0 : i32
    %c0_i32_0 = arith.constant 0 : i32
    return %arg0, %c0_i32 : i32, i32
  }
  func.func @transform_2(%arg0: i32) -> (i32, i32) {
    %c0_i32 = arith.constant 0 : i32
    %c0_i32_0 = arith.constant 0 : i32
    %c0_i32_1 = arith.constant 0 : i32
    return %c0_i32, %c0_i32_0 : i32, i32
  }
  func.func @transform_3(%arg0: i32) -> (i32, i32) {
    %c0_i32 = arith.constant 0 : i32
    %c0_i32_0 = arith.constant 0 : i32
    return %c0_i32, %arg0 : i32, i32
  }
}

</mosaic_0001>

<llo_original>
// kernel: tpu_custom_call.1
$region0: #{tpu_custom_call.1}
  #allocation0 [shape = 'u32[]', space=smem, size = 0x4, offset = 0x4, fixed_abs, tag = 'smem constant byte address 0x4 - core index']
  #allocation1 [shape = 'u32[144,128]{1,0:T(1,128)}', space=vmem, size = 0x12000, scoped, tag = 'internal scratch']
  %s0 = inlined_call_operand.vmem [shape: f32[16,32], index: 0, kind: input, shape index: {}]
  %s1 = inlined_call_operand.vmem [shape: f32[16,32], index: 1, kind: input, shape index: {}]
  %s2 = inlined_call_operand.vmem [shape: f32[56,32], index: 2, kind: input, shape index: {}]
  %s3 = inlined_call_operand.hbm [shape: f32[4,16], index: 3, kind: output, shape index: {}]
  %s4 = sld [smem:[#allocation0]]
  $region22: #{tpu_custom_call.1} parent=0
    _
  %s6 = ssub.s32 1, %s4
  %s7 = scalar_select 0, %s6, %s4
  $region1: #{tpu_custom_call.1} parent=0
    #allocation2 [shape = 'u8[2048]{0}', space=vmem, size = 0x800, scoped, tag = 'output window, operand 0, single buffered']
    #allocation3 [shape = 's32[1]{0}', space=sflag, size = 0x4, scoped, tag = 'scoped memory for tpu_custom_call.1']
    %8 = vsyncpa [#allocation3], 0
    // Predicated region
    $region2: #{tpu_custom_call.1} parent=1 // pred_check
      _
    $region3: #{tpu_custom_call.1} parent=1 // pred_check_branch
      %10 = sbr.rel (0) target = $region5
    $region4: #{tpu_custom_call.1} parent=1 // pred_region
      _
    $region5: #{tpu_custom_call.1} parent=1 // pred_fallthru
      _
    // Predicated region
    $region6: #{tpu_custom_call.1} parent=1 // pred_check
      _
    $region7: #{tpu_custom_call.1} parent=1 // pred_check_branch
      %12 = sbr.rel (0) target = $region9
    $region8: #{tpu_custom_call.1} parent=1 // pred_region
      _
    $region9: #{tpu_custom_call.1} parent=1 // pred_fallthru
      _
    // Predicated region
    $region10: #{tpu_custom_call.1} parent=1 // pred_check
      _
    $region11: #{tpu_custom_call.1} parent=1 // pred_check_branch
      %14 = sbr.rel (0) target = $region13
    $region12: #{tpu_custom_call.1} parent=1 // pred_region
      _
    $region13: #{tpu_custom_call.1} parent=1 // pred_fallthru
      _
    %v15 = vld [vmem:[%s0] sm:$0xff]
    %v16 = vld [vmem:[%s0 + $0x8] sm:$0xff]
    %v17 = vld [vmem:[%s1] sm:$0xff]
    %v18 = vld [vmem:[%s1 + $0x8] sm:$0xff]
    %v19 = vld [vmem:[%s2] sm:$0xff]
    %v20 = vld [vmem:[%s2 + $0x8] sm:$0xff]
    %v21 = vld [vmem:[%s2 + $0x10] sm:$0xff]
    %v22 = vld [vmem:[%s2 + $0x18] sm:$0xff]
    %v23 = vld [vmem:[%s2 + $0x20] sm:$0xff]
    %v24 = vld [vmem:[%s2 + $0x28] sm:$0xff]
    %v25 = vld [vmem:[%s2 + $0x30] sm:$0xff]
    %vm26 = vcmask 261120
    %v28 = vsel %vm26, %v19, 0
    %v31 = vsel %vm26, %v20, 0
    %v34 = vsel %vm26, %v21, 0
    %v37 = vsel %vm26, %v22, 0
    %v40 = vsel %vm26, %v23, 0
    %v43 = vsel %vm26, %v24, 0
    %v46 = vsel %vm26, %v25, 0
    %v49 = vsel %vm26, %v15, 0
    %v52 = vsel %vm26, %v16, 0
    %54 = vmatprep.subr.mxu0 0.0
    %55 = vmatpush1.xpose.msra.mxu0 %v49
    %56 = vmatprep.subr.mxu0 0.0
    %57 = vmatpush1.xpose.msra.mxu0 %v52
    %58 = vmatprep.subr.mxu0 0.0
    %59 = vmatpush1.xpose.msra.mxu0 0.0
    %60 = vmatprep.subr.mxu0 0.0
    %61 = vmatpush1.xpose.msra.mxu0 0.0
    %62 = vmatprep.subr.mxu0 0.0
    %63 = vmatpush1.xpose.msra.mxu0 0.0
    %64 = vmatprep.subr.mxu0 0.0
    %65 = vmatpush1.xpose.msra.mxu0 0.0
    %66 = vmatprep.subr.mxu0 0.0
    %67 = vmatpush1.xpose.msra.mxu0 0.0
    %68 = vmatprep.subr.mxu0 0.0
    %69 = vmatpush1.xpose.msra.mxu0 0.0
    %70 = vmatprep.subr.mxu0 0.0
    %71 = vmatpush1.xpose.msra.mxu0 0.0
    %72 = vmatprep.subr.mxu0 0.0
    %73 = vmatpush1.xpose.msra.mxu0 0.0
    %74 = vmatprep.subr.mxu0 0.0
    %75 = vmatpush1.xpose.msra.mxu0 0.0
    %76 = vmatprep.subr.mxu0 0.0
    %77 = vmatpush1.xpose.msra.mxu0 0.0
    %78 = vmatprep.subr.mxu0 0.0
    %79 = vmatpush1.xpose.msra.mxu0 0.0
    %80 = vmatprep.subr.mxu0 0.0
    %81 = vmatpush1.xpose.msra.mxu0 0.0
    %82 = vmatprep.subr.mxu0 0.0
    %83 = vmatpush1.xpose.msra.mxu0 0.0
    %84 = vmatprep.subr.mxu0 0.0
    %85 = vmatpush1.xpose.msra.mxu0 0.0
    %86 = vmatprep.subr.mxu0 0.0
    %87 = vmatpush1.xpose.msra.mxu0 0.0
    %88 = vmatprep.subr.mxu0 0.0
    %89 = vmatpush1.xpose.msra.mxu0 0.0
    %90 = vmatprep.subr.mxu0 0.0
    %91 = vmatpush1.xpose.msra.mxu0 0.0
    %92 = vmatprep.subr.mxu0 0.0
    %93 = vmatpush1.xpose.msra.mxu0 0.0
    %94 = vmatprep.subr.mxu0 0.0
    %95 = vmatpush1.xpose.msra.mxu0 0.0
    %96 = vmatprep.subr.mxu0 0.0
    %97 = vmatpush1.xpose.msra.mxu0 0.0
    %98 = vmatprep.subr.mxu0 0.0
    %99 = vmatpush1.xpose.msra.mxu0 0.0
    %100 = vmatprep.subr.mxu0 0.0
    %101 = vmatpush1.xpose.msra.mxu0 0.0
    %102 = vmatprep.subr.mxu0 0.0
    %103 = vmatpush1.xpose.msra.mxu0 0.0
    %104 = vmatprep.subr.mxu0 0.0
    %105 = vmatpush1.xpose.msra.mxu0 0.0
    %106 = vmatprep.subr.mxu0 0.0
    %107 = vmatpush1.xpose.msra.mxu0 0.0
    %108 = vmatprep.subr.mxu0 0.0
    %109 = vmatpush1.xpose.msra.mxu0 0.0
    %110 = vmatprep.subr.mxu0 0.0
    %111 = vmatpush1.xpose.msra.mxu0 0.0
    %112 = vmatprep.subr.mxu0 0.0
    %113 = vmatpush1.xpose.msra.mxu0 0.0
    %114 = vmatprep.subr.mxu0 0.0
    %115 = vmatpush1.xpose.msra.mxu0 0.0
    %116 = vmatprep.subr.mxu0 0.0
    %117 = vmatpush1.xpose.msra.mxu0 0.0
    %118 = vmatprep.mubr.f32.mxu0 0.0
    %119 = vmatmul.mubr.f32.gmra.mrb[0].mxu0 %v28
    %v120 = vpop.f32.mrb[0].mxu0
    %v121 = vadd.f32 0.0, %v120
    %v122 = vpop.f32.mrb[0].mxu0
    %123 = vmatprep.mubr.f32.mxu0 0.0
    %124 = vmatmul.mubr.f32.gmra.mrb[0].mxu0 %v31
    %v125 = vpop.f32.mrb[0].mxu0
    %v126 = vadd.f32 0.0, %v125
    %v127 = vpop.f32.mrb[0].mxu0
    %128 = vmatprep.mubr.f32.mxu0 0.0
    %129 = vmatmul.mubr.f32.gmra.mrb[0].mxu0 %v34
    %v130 = vpop.f32.mrb[0].mxu0
    %v131 = vadd.f32 0.0, %v130
    %v132 = vpop.f32.mrb[0].mxu0
    %133 = vmatprep.mubr.f32.mxu0 0.0
    %134 = vmatmul.mubr.f32.gmra.mrb[0].mxu0 %v37
    %v135 = vpop.f32.mrb[0].mxu0
    %v136 = vadd.f32 0.0, %v135
    %v137 = vpop.f32.mrb[0].mxu0
    %138 = vmatprep.mubr.f32.mxu0 0.0
    %139 = vmatmul.mubr.f32.gmra.mrb[0].mxu0 %v40
    %v140 = vpop.f32.mrb[0].mxu0
    %v141 = vadd.f32 0.0, %v140
    %v142 = vpop.f32.mrb[0].mxu0
    %143 = vmatprep.mubr.f32.mxu0 0.0
    %144 = vmatmul.mubr.f32.gmra.mrb[0].mxu0 %v43
    %v145 = vpop.f32.mrb[0].mxu0
    %v146 = vadd.f32 0.0, %v145
    %v147 = vpop.f32.mrb[0].mxu0
    %148 = vmatprep.mubr.f32.mxu0 0.0
    %149 = vmatmul.mubr.f32.gmra.mrb[0].mxu0 %v46
    %v150 = vpop.f32.mrb[0].mxu0
    %v151 = vadd.f32 0.0, %v150
    %v152 = vpop.f32.mrb[0].mxu0
    %153 = vdwg.mxu0
    %v155 = vsel %vm26, %v17, 0
    %v158 = vsel %vm26, %v18, 0
    %160 = vmatprep.subr.mxu0 0.0
    %161 = vmatpush1.xpose.msra.mxu0 %v155
    %162 = vmatprep.subr.mxu0 0.0
    %163 = vmatpush1.xpose.msra.mxu0 %v158
    %164 = vmatprep.subr.mxu0 0.0
    %165 = vmatpush1.xpose.msra.mxu0 0.0
    %166 = vmatprep.subr.mxu0 0.0
    %167 = vmatpush1.xpose.msra.mxu0 0.0
    %168 = vmatprep.subr.mxu0 0.0
    %169 = vmatpush1.xpose.msra.mxu0 0.0
    %170 = vmatprep.subr.mxu0 0.0
    %171 = vmatpush1.xpose.msra.mxu0 0.0
    %172 = vmatprep.subr.mxu0 0.0
    %173 = vmatpush1.xpose.msra.mxu0 0.0
    %174 = vmatprep.subr.mxu0 0.0
    %175 = vmatpush1.xpose.msra.mxu0 0.0
    %176 = vmatprep.subr.mxu0 0.0
    %177 = vmatpush1.xpose.msra.mxu0 0.0
    %178 = vmatprep.subr.mxu0 0.0
    %179 = vmatpush1.xpose.msra.mxu0 0.0
    %180 = vmatprep.subr.mxu0 0.0
    %181 = vmatpush1.xpose.msra.mxu0 0.0
    %182 = vmatprep.subr.mxu0 0.0
    %183 = vmatpush1.xpose.msra.mxu0 0.0
    %184 = vmatprep.subr.mxu0 0.0
    %185 = vmatpush1.xpose.msra.mxu0 0.0
    %186 = vmatprep.subr.mxu0 0.0
    %187 = vmatpush1.xpose.msra.mxu0 0.0
    %188 = vmatprep.subr.mxu0 0.0
    %189 = vmatpush1.xpose.msra.mxu0 0.0
    %190 = vmatprep.subr.mxu0 0.0
    %191 = vmatpush1.xpose.msra.mxu0 0.0
    %192 = vmatprep.subr.mxu0 0.0
    %193 = vmatpush1.xpose.msra.mxu0 0.0
    %194 = vmatprep.subr.mxu0 0.0
    %195 = vmatpush1.xpose.msra.mxu0 0.0
    %196 = vmatprep.subr.mxu0 0.0
    %197 = vmatpush1.xpose.msra.mxu0 0.0
    %198 = vmatprep.subr.mxu0 0.0
    %199 = vmatpush1.xpose.msra.mxu0 0.0
    %200 = vmatprep.subr.mxu0 0.0
    %201 = vmatpush1.xpose.msra.mxu0 0.0
    %202 = vmatprep.subr.mxu0 0.0
    %203 = vmatpush1.xpose.msra.mxu0 0.0
    %204 = vmatprep.subr.mxu0 0.0
    %205 = vmatpush1.xpose.msra.mxu0 0.0
    %206 = vmatprep.subr.mxu0 0.0
    %207 = vmatpush1.xpose.msra.mxu0 0.0
    %208 = vmatprep.subr.mxu0 0.0
    %209 = vmatpush1.xpose.msra.mxu0 0.0
    %210 = vmatprep.subr.mxu0 0.0
    %211 = vmatpush1.xpose.msra.mxu0 0.0
    %212 = vmatprep.subr.mxu0 0.0
    %213 = vmatpush1.xpose.msra.mxu0 0.0
    %214 = vmatprep.subr.mxu0 0.0
    %215 = vmatpush1.xpose.msra.mxu0 0.0
    %216 = vmatprep.subr.mxu0 0.0
    %217 = vmatpush1.xpose.msra.mxu0 0.0
    %218 = vmatprep.subr.mxu0 0.0
    %219 = vmatpush1.xpose.msra.mxu0 0.0
    %220 = vmatprep.subr.mxu0 0.0
    %221 = vmatpush1.xpose.msra.mxu0 0.0
    %222 = vmatprep.subr.mxu0 0.0
    %223 = vmatpush1.xpose.msra.mxu0 0.0
    %224 = vmatprep.mubr.f32.mxu0 0.0
    %225 = vmatmul.mubr.f32.gmra.mrb[0].mxu0 %v28
    %v226 = vpop.f32.mrb[0].mxu0
    %v227 = vadd.f32 0.0, %v226
    %v228 = vpop.f32.mrb[0].mxu0
    %229 = vmatprep.mubr.f32.mxu0 0.0
    %230 = vmatmul.mubr.f32.gmra.mrb[0].mxu0 %v31
    %v231 = vpop.f32.mrb[0].mxu0
    %v232 = vadd.f32 0.0, %v231
    %v233 = vpop.f32.mrb[0].mxu0
    %234 = vmatprep.mubr.f32.mxu0 0.0
    %235 = vmatmul.mubr.f32.gmra.mrb[0].mxu0 %v34
    %v236 = vpop.f32.mrb[0].mxu0
    %v237 = vadd.f32 0.0, %v236
    %v238 = vpop.f32.mrb[0].mxu0
    %239 = vmatprep.mubr.f32.mxu0 0.0
    %240 = vmatmul.mubr.f32.gmra.mrb[0].mxu0 %v37
    %v241 = vpop.f32.mrb[0].mxu0
    %v242 = vadd.f32 0.0, %v241
    %v243 = vpop.f32.mrb[0].mxu0
    %244 = vmatprep.mubr.f32.mxu0 0.0
    %245 = vmatmul.mubr.f32.gmra.mrb[0].mxu0 %v40
    %v246 = vpop.f32.mrb[0].mxu0
    %v247 = vadd.f32 0.0, %v246
    %v248 = vpop.f32.mrb[0].mxu0
    %249 = vmatprep.mubr.f32.mxu0 0.0
    %250 = vmatmul.mubr.f32.gmra.mrb[0].mxu0 %v43
    %v251 = vpop.f32.mrb[0].mxu0
    %v252 = vadd.f32 0.0, %v251
    %v253 = vpop.f32.mrb[0].mxu0
    %254 = vmatprep.mubr.f32.mxu0 0.0
    %255 = vmatmul.mubr.f32.gmra.mrb[0].mxu0 %v46
    %v256 = vpop.f32.mrb[0].mxu0
    %v257 = vadd.f32 0.0, %v256
    %v258 = vpop.f32.mrb[0].mxu0
    %259 = vdwg.mxu0
    %v260 = vmul.f32 %v121, %v227
    %v261 = vmul.f32 %v126, %v232
    %v262 = vmul.f32 %v131, %v237
    %v263 = vmul.f32 %v136, %v242
    %v264 = vmul.f32 %v141, %v247
    %v265 = vmul.f32 %v146, %v252
    %v266 = vmul.f32 %v151, %v257
    %vm267 = vcmask 130048
    %v268 = vsel %vm267, %v260, 0.0
    %v269 = vrot.slane %v268, 4
    %v270 = vadd.f32 %v268, %v269
    %v271 = vrot.slane %v270, 2
    %v272 = vadd.f32 %v270, %v271
    %v273 = vrot.slane %v272, 1
    %v274 = vadd.f32 %v272, %v273
    %v275 = vsel %vm267, %v261, 0.0
    %v276 = vrot.slane %v275, 4
    %v277 = vadd.f32 %v275, %v276
    %v278 = vrot.slane %v277, 2
    %v279 = vadd.f32 %v277, %v278
    %v280 = vrot.slane %v279, 1
    %v281 = vadd.f32 %v279, %v280
    %v282 = vsel %vm267, %v262, 0.0
    %v283 = vrot.slane %v282, 4
    %v284 = vadd.f32 %v282, %v283
    %v285 = vrot.slane %v284, 2
    %v286 = vadd.f32 %v284, %v285
    %v287 = vrot.slane %v286, 1
    %v288 = vadd.f32 %v286, %v287
    %v289 = vsel %vm267, %v263, 0.0
    %v290 = vsel %vm267, %v264, 0.0
    %v291 = vadd.f32 %v289, %v290
    %v292 = vsel %vm267, %v265, 0.0
    %v293 = vadd.f32 %v291, %v292
    %v294 = vsel %vm267, %v266, 0.0
    %v295 = vadd.f32 %v293, %v294
    %v296 = vrot.slane %v295, 4
    %v297 = vadd.f32 %v295, %v296
    %v298 = vrot.slane %v297, 2
    %v299 = vadd.f32 %v297, %v298
    %v300 = vrot.slane %v299, 1
    %v301 = vadd.f32 %v299, %v300
    %vm305 = vcmask 1041409
    %v306 = vsel %vm305, %v281, %v274
    %vm307 = vcmask 1042434
    %v308 = vsel %vm307, %v288, %v306
    %vm310 = vcmask 124928
    %311 = vst.msk [vmem:[#allocation2] sm:$0x7] %vm310, %v308
    %vm312 = vcmask 122880
    %313 = vst.msk [vmem:[#allocation2 + $0x3] sm:$0x1] %vm312, %v301
    // Predicated region
    $region14: #{tpu_custom_call.1} parent=1 // pred_check
      _
    $region15: #{tpu_custom_call.1} parent=1 // pred_check_branch
      %315 = sbr.rel (0) target = $region17
    $region16: #{tpu_custom_call.1} parent=1 // pred_region
      %s317 = ssub.s32 64, 64
      %318 = vsyncadd [#allocation3], %s317
      %s320 = sshll.u32 [#allocation2], 4
      %s321 = int_to_ptr.vmem [resolvable:$true] %s320
      %323 = dma.vmem_to_hbm [thread:$0]  %s321, 64, %s3, [#allocation3]
    $region17: #{tpu_custom_call.1} parent=1 // pred_fallthru
      _
    // Predicated region
    $region18: #{tpu_custom_call.1} parent=1 // pred_check
      _
    $region19: #{tpu_custom_call.1} parent=1 // pred_check_branch
      %325 = sbr.rel (0) target = $region21
    $region20: #{tpu_custom_call.1} parent=1 // pred_region
      %326 = dma.done [#allocation3], 64
    $region21: #{tpu_custom_call.1} parent=1 // pred_fallthru
      _
    %327 = vsyncpa [#allocation3], 1

</llo_original>
